<compile_context>
chip_gen: v7x
topology: tpu7x:2x2x1
jax: 0.10.0
libtpu: 0.0.40
codegen_flags: <defaults>
</compile_context>

<pallas_src>
import jax
import jax.numpy as jnp
from jax.experimental import pallas as pl
from jax.experimental.pallas import tpu as pltpu


def _mock_embedding_kernel(x_ref, w_ref, b_ref, o_ref):
    # x_ref: (B, F) input dtype; w_ref: (E, F) bf16 (lane-dense);
    # b_ref: (1, E) f32; o_ref: (B, E) f32
    x = x_ref[...]
    if x.dtype != jnp.bfloat16:
        x = x.astype(jnp.bfloat16)          # in-kernel cast on the VPU
    w = w_ref[...]                           # (E, F) bf16

    # out[b, e] = sum_f x[b, f] * w[e, f]  — NT contraction on the MXU,
    # f32 accumulation. (E, F) weight layout keeps the long F axis lane-dense.
    out = jax.lax.dot_general(
        x, w,
        dimension_numbers=(((1,), (1,)), ((), ())),
        preferred_element_type=jnp.float32,
    )
    out = out + b_ref[...]                   # broadcast bias over batch

    # out[1, :] = 0.5 — fused into the single output store via a row mask.
    # (PyTorch would raise IndexError when B == 1; here it is skipped at
    # trace time — intentional semantic divergence.)
    B, E = o_ref.shape
    if B > 1:
        row = jax.lax.broadcasted_iota(jnp.int32, (B, E), 0)
        out = jnp.where(row == 1, 0.5, out)

    o_ref[...] = out.astype(o_ref.dtype)


def mock_embedding_forward(data, weight, bias):
    """data: (B, C, H, W); weight: (E, F) bf16 with F = C*min(H,100)*min(W,100); bias: (E,)."""
    B, C, H, W = data.shape
    HC, WC = min(H, 100), min(W, 100)

    x = data
    if HC != H or WC != W:
        # Trace-time no-op when H, W <= 100.
        # TODO(synk): real H,W>100 path should DMA (100,100) windows in-kernel
        # (crop+reshape here forces an un-fused HBM copy of the activations).
        x = x[:, :, :HC, :WC]
    # Bitcast-level flatten of contiguous NCHW data; dtype cast happens in-kernel.
    x2d = x.reshape(B, C * HC * WC)

    E, F = weight.shape
    assert F == C * HC * WC, (weight.shape, C * HC * WC)

    b2d = bias.astype(jnp.float32).reshape(1, E)

    # Gridless path: every operand lives whole in VMEM. Guard the budget so a
    # "real"-sized call fails loudly instead of blowing scoped VMEM (v5e: 16 MiB
    # default). Above this, switch to the gridded K/batch-tiled path (TODO above).
    bytes_accessed = (
        x2d.size * x2d.dtype.itemsize
        + weight.size * weight.dtype.itemsize
        + b2d.size * b2d.dtype.itemsize
        + B * E * 4
    )
    assert bytes_accessed < 12 * 1024 * 1024, (
        "inputs too large for the gridless VMEM-resident path; use a tiled grid"
    )

    cost = pl.CostEstimate(
        flops=2 * B * F * E,
        transcendentals=0,
        bytes_accessed=bytes_accessed,
    )

    vmem = pltpu.MemorySpace.VMEM
    return pl.pallas_call(
        _mock_embedding_kernel,
        out_shape=jax.ShapeDtypeStruct((B, E), jnp.float32),
        in_specs=[
            pl.BlockSpec(memory_space=vmem),   # x2d
            pl.BlockSpec(memory_space=vmem),   # weight (E, F) bf16
            pl.BlockSpec(memory_space=vmem),   # bias (1, E) f32
        ],
        out_specs=pl.BlockSpec(memory_space=vmem),
        cost_estimate=cost,
    )(x2d, weight, b2d)


if __name__ == "__main__":
    # Small shapes consistent with the forward: batch=2 (module writes row 1),
    # channels=4, spatial=16 (<100, so the :100 crop is a pass-through).
    B, C, H, W = 2, 4, 16, 16
    EMBEDDING_DIM = 32
    F = C * H * W  # 1024 flattened features -> LazyLinear in_features

    key = jax.random.PRNGKey(0)
    k_data, k_w, k_b = jax.random.split(key, 3)

    data = jax.random.normal(k_data, (B, C, H, W), dtype=jnp.float32)
    weight_f32 = jax.random.normal(k_w, (EMBEDDING_DIM, F), dtype=jnp.float32) * 0.02
    bias = jax.random.normal(k_b, (EMBEDDING_DIM,), dtype=jnp.float32) * 0.02

    # One-time ("model init") cast of the Linear weight to bf16 — the per-call
    # wrapper does no weight casting / copying.
    weight = weight_f32.astype(jnp.bfloat16)

    fwd = jax.jit(mock_embedding_forward)
    out = jax.block_until_ready(fwd(data, weight, bias))

    # Reference check in plain JAX (same math as the PyTorch module, f32).
    # Tolerance is loosened for the bf16 MXU inputs (f32 accumulation).
    x_ref = data[:, :, :100, :100].astype(jnp.float32).reshape(B, -1)
    ref = x_ref @ weight_f32.T + bias
    ref = ref.at[1, :].set(0.5)

    assert out.shape == (B, EMBEDDING_DIM), out.shape
    max_err = float(jnp.max(jnp.abs(out - ref)))
    assert jnp.allclose(out, ref, atol=3e-2, rtol=3e-2), max_err

    print("KERNEL_OK")
</pallas_src>

<mosaic_0001>
module attributes {stable_mosaic.version = 11 : i64} {
  func.func @_mock_embedding_kernel(%arg0: memref<2x1024xf32, #tpu.memory_space<vmem>>, %arg1: memref<32x1024xbf16, #tpu.memory_space<vmem>>, %arg2: memref<1x32xf32, #tpu.memory_space<vmem>>, %arg3: memref<2x32xf32, #tpu.memory_space<vmem>>) attributes {dimension_semantics = [], scalar_prefetch = 0 : i64, scratch_operands = 0 : i64, tpu.core_type = #tpu.core_type<tc>} {
    %c0 = arith.constant 0 : index
    %c0_0 = arith.constant 0 : index
    %0 = vector.load %arg0[%c0, %c0_0] : memref<2x1024xf32, #tpu.memory_space<vmem>>, vector<2x1024xf32>
    %1 = arith.truncf %0 : vector<2x1024xf32> to vector<2x1024xbf16>
    %c0_1 = arith.constant 0 : index
    %c0_2 = arith.constant 0 : index
    %2 = vector.load %arg1[%c0_1, %c0_2] : memref<32x1024xbf16, #tpu.memory_space<vmem>>, vector<32x1024xbf16>
    %cst = arith.constant dense<0.000000e+00> : vector<2x32xf32>
    %3 = tpu.matmul %1, %2, %cst {dimension_numbers = #tpu.dot_dimension_numbers<[1], [1], [0], [0], [0, 0, 1, 0], [], []>} : vector<2x1024xbf16>, vector<32x1024xbf16>, vector<2x32xf32> -> vector<2x32xf32>
    %c0_3 = arith.constant 0 : index
    %c0_4 = arith.constant 0 : index
    %4 = vector.load %arg2[%c0_3, %c0_4] : memref<1x32xf32, #tpu.memory_space<vmem>>, vector<1x32xf32>
    %5 = vector.broadcast %4 : vector<1x32xf32> to vector<2x32xf32>
    %6 = arith.addf %3, %5 : vector<2x32xf32>
    %7 = tpu.iota {dimensions = array<i32: 0>} : vector<2x32xi32>
    %c1_i32 = arith.constant 1 : i32
    %8 = vector.broadcast %c1_i32 : i32 to vector<2x32xi32>
    %9 = arith.cmpi eq, %7, %8 : vector<2x32xi32>
    %cst_5 = arith.constant 5.000000e-01 : f32
    %10 = vector.broadcast %cst_5 : f32 to vector<2x32xf32>
    %11 = arith.select %9, %10, %6 : vector<2x32xi1>, vector<2x32xf32>
    %c0_6 = arith.constant 0 : index
    %c0_7 = arith.constant 0 : index
    %12 = vector.load %arg3[%c0_6, %c0_7] : memref<2x32xf32, #tpu.memory_space<vmem>>, vector<2x32xf32>
    tpu.vector_store %arg3[%c0_6, %c0_7], %11 {strides = array<i32>} : memref<2x32xf32, #tpu.memory_space<vmem>>, vector<2x32xf32>,
    return
  }
}

</mosaic_0001>

<llo_original>
// kernel: mock_embedding_forward.1
$region0: #{mock_embedding_forward.1}
  #allocation0 [shape = 'u32[]', space=smem, size = 0x4, offset = 0x4, fixed_abs, tag = 'smem constant byte address 0x4 - core index']
  #allocation1 [shape = 'u32[144,128]{1,0:T(1,128)}', space=vmem, size = 0x12000, scoped, tag = 'internal scratch']
  %s0 = inlined_call_operand.vmem [shape: f32[2,1024], index: 0, kind: input, shape index: {}]
  %s1 = inlined_call_operand.vmem [shape: bf16[32,1024], index: 1, kind: input, shape index: {}]
  %s2 = inlined_call_operand.vmem [shape: f32[1,32], index: 2, kind: input, shape index: {}]
  %s3 = inlined_call_operand.hbm [shape: f32[2,32], index: 3, kind: output, shape index: {}]
  %s4 = sld [smem:[#allocation0]]
  $region22: #{mock_embedding_forward.1} parent=0
    _
  %s6 = ssub.s32 1, %s4
  %s7 = scalar_select 0, %s6, %s4
  $region1: #{mock_embedding_forward.1} parent=0
    #allocation2 [shape = 'u8[1024]{0}', space=vmem, size = 0x400, scoped, tag = 'output window, operand 0, single buffered']
    #allocation3 [shape = 's32[1]{0}', space=sflag, size = 0x4, scoped, tag = 'scoped memory for mock_embedding_forward.1']
    %8 = vsyncpa [#allocation3], 0
    // Predicated region
    $region2: #{mock_embedding_forward.1} parent=1 // pred_check
      _
    $region3: #{mock_embedding_forward.1} parent=1 // pred_check_branch
      %10 = sbr.rel (0) target = $region5
    $region4: #{mock_embedding_forward.1} parent=1 // pred_region
      _
    $region5: #{mock_embedding_forward.1} parent=1 // pred_fallthru
      _
    // Predicated region
    $region6: #{mock_embedding_forward.1} parent=1 // pred_check
      _
    $region7: #{mock_embedding_forward.1} parent=1 // pred_check_branch
      %12 = sbr.rel (0) target = $region9
    $region8: #{mock_embedding_forward.1} parent=1 // pred_region
      _
    $region9: #{mock_embedding_forward.1} parent=1 // pred_fallthru
      _
    // Predicated region
    $region10: #{mock_embedding_forward.1} parent=1 // pred_check
      _
    $region11: #{mock_embedding_forward.1} parent=1 // pred_check_branch
      %14 = sbr.rel (0) target = $region13
    $region12: #{mock_embedding_forward.1} parent=1 // pred_region
      _
    $region13: #{mock_embedding_forward.1} parent=1 // pred_fallthru
      _
    %v16 = vld [vmem:[%s0] sm:$0xff]
    %v17 = vld [vmem:[%s0 + $0x8] sm:$0xff]
    %v20 = vcombine.high %v16, %v16
    %v22 = vunpack.c.l.s4 1983009808
    %v23 = vunpack.c.0.s8 %v22
    %v24 = vlaneseq
    %v25 = vshrl.u32 %v24, 7
    %v26 = vsub.s32 %v23, %v25
    %v27 = vrot.slane %v16, %v26
    %v29 = vunpack.c.l.s4 1983009808
    %v30 = vunpack.c.0.s8 %v29
    %v31 = vlaneseq
    %v32 = vshrl.u32 %v31, 7
    %v33 = vsub.s32 %v30, %v32
    %v34 = vrot.slane %v20, %v33
    %v35 = vcombine.high %v27, %v27
    %v36 = vcombine.high %v34, %v34
    %v37 = vcombine.high %v17, %v17
    %v39 = vunpack.c.l.s4 1983009808
    %v40 = vunpack.c.0.s8 %v39
    %v41 = vlaneseq
    %v42 = vshrl.u32 %v41, 7
    %v43 = vsub.s32 %v40, %v42
    %v44 = vrot.slane %v17, %v43
    %v46 = vunpack.c.l.s4 1983009808
    %v47 = vunpack.c.0.s8 %v46
    %v48 = vlaneseq
    %v49 = vshrl.u32 %v48, 7
    %v50 = vsub.s32 %v47, %v49
    %v51 = vrot.slane %v37, %v50
    %v52 = vcombine.high %v44, %v44
    %v53 = vcombine.high %v51, %v51
    %v62 = vpack.c.bf16 %v27, %v27
    %v63 = vpack.c.bf16 %v35, %v35
    %v64 = vpack.c.bf16 %v34, %v34
    %v65 = vpack.c.bf16 %v36, %v36
    %v66 = vpack.c.bf16 %v44, %v44
    %v67 = vpack.c.bf16 %v52, %v52
    %v68 = vpack.c.bf16 %v51, %v51
    %v69 = vpack.c.bf16 %v53, %v53
    %v70 = vld [vmem:[%s1] sm:$0xff]
    %v71 = vld [vmem:[%s1 + $0x8] sm:$0xff]
    %v72 = vld [vmem:[%s1 + $0x10] sm:$0xff]
    %v73 = vld [vmem:[%s1 + $0x18] sm:$0xff]
    %v74 = vld [vmem:[%s1 + $0x20] sm:$0xff]
    %v75 = vld [vmem:[%s1 + $0x28] sm:$0xff]
    %v76 = vld [vmem:[%s1 + $0x30] sm:$0xff]
    %v77 = vld [vmem:[%s1 + $0x38] sm:$0xff]
    %v78 = vld [vmem:[%s1 + $0x40] sm:$0xff]
    %v79 = vld [vmem:[%s1 + $0x48] sm:$0xff]
    %v80 = vld [vmem:[%s1 + $0x50] sm:$0xff]
    %v81 = vld [vmem:[%s1 + $0x58] sm:$0xff]
    %v82 = vld [vmem:[%s1 + $0x60] sm:$0xff]
    %v83 = vld [vmem:[%s1 + $0x68] sm:$0xff]
    %v84 = vld [vmem:[%s1 + $0x70] sm:$0xff]
    %v85 = vld [vmem:[%s1 + $0x78] sm:$0xff]
    %v86 = vld [vmem:[%s2] sm:$0x1]
    %v88 = vlaneseq
    %v89 = vshrl.u32 %v88, 7
    %v90 = vsub.s32 0, %v89
    %v91 = vrot.slane %v86, %v90
    %v109 = vunpack.c.l.b16 %v70
    %v110 = vunpack.c.h.b16 %v70
    %v111 = vunpack.c.l.b16 %v71
    %v112 = vunpack.c.h.b16 %v71
    %v113 = vunpack.c.l.b16 %v72
    %v114 = vunpack.c.h.b16 %v72
    %v115 = vunpack.c.l.b16 %v73
    %v116 = vunpack.c.h.b16 %v73
    %v117 = vunpack.c.l.b16 %v74
    %v118 = vunpack.c.h.b16 %v74
    %v119 = vunpack.c.l.b16 %v75
    %v120 = vunpack.c.h.b16 %v75
    %v121 = vunpack.c.l.b16 %v76
    %v122 = vunpack.c.h.b16 %v76
    %v123 = vunpack.c.l.b16 %v77
    %v124 = vunpack.c.h.b16 %v77
    %v125 = vunpack.c.l.b16 %v78
    %v126 = vunpack.c.h.b16 %v78
    %v127 = vunpack.c.l.b16 %v79
    %v128 = vunpack.c.h.b16 %v79
    %v129 = vunpack.c.l.b16 %v80
    %v130 = vunpack.c.h.b16 %v80
    %v131 = vunpack.c.l.b16 %v81
    %v132 = vunpack.c.h.b16 %v81
    %v133 = vunpack.c.l.b16 %v82
    %v134 = vunpack.c.h.b16 %v82
    %v135 = vunpack.c.l.b16 %v83
    %v136 = vunpack.c.h.b16 %v83
    %v137 = vunpack.c.l.b16 %v84
    %v138 = vunpack.c.h.b16 %v84
    %v139 = vunpack.c.l.b16 %v85
    %v140 = vunpack.c.h.b16 %v85
    %v141 = vpack.c.b16 %v117, %v109
    %v142 = vpack.c.b16 %v118, %v110
    %v143 = vpack.c.b16 %v119, %v111
    %v144 = vpack.c.b16 %v120, %v112
    %v145 = vpack.c.b16 %v121, %v113
    %v146 = vpack.c.b16 %v122, %v114
    %v147 = vpack.c.b16 %v123, %v115
    %v148 = vpack.c.b16 %v124, %v116
    %v149 = vpack.c.b16 %v133, %v125
    %v150 = vpack.c.b16 %v134, %v126
    %v151 = vpack.c.b16 %v135, %v127
    %v152 = vpack.c.b16 %v136, %v128
    %v153 = vpack.c.b16 %v137, %v129
    %v154 = vpack.c.b16 %v138, %v130
    %v155 = vpack.c.b16 %v139, %v131
    %v156 = vpack.c.b16 %v140, %v132
    %173 = vmatprep.subr.bf16.mxu0 %v142
    %174 = vmatpush1.bf16.xpose.msra.mxu0 %v141
    %175 = vmatprep.subr.bf16.mxu0 %v150
    %176 = vmatpush1.bf16.xpose.msra.mxu0 %v149
    %177 = vmatprep.subr.bf16.mxu0 0
    %178 = vmatpush1.bf16.xpose.msra.mxu0 0
    %179 = vmatprep.subr.bf16.mxu0 0
    %180 = vmatpush1.bf16.xpose.msra.mxu0 0
    %181 = vmatprep.subr.bf16.mxu0 0
    %182 = vmatpush1.bf16.xpose.msra.mxu0 0
    %183 = vmatprep.subr.bf16.mxu0 0
    %184 = vmatpush1.bf16.xpose.msra.mxu0 0
    %185 = vmatprep.subr.bf16.mxu0 0
    %186 = vmatpush1.bf16.xpose.msra.mxu0 0
    %187 = vmatprep.subr.bf16.mxu0 0
    %188 = vmatpush1.bf16.xpose.msra.mxu0 0
    %189 = vmatprep.subr.bf16.mxu0 0
    %190 = vmatpush1.bf16.xpose.msra.mxu0 0
    %191 = vmatprep.subr.bf16.mxu0 0
    %192 = vmatpush1.bf16.xpose.msra.mxu0 0
    %193 = vmatprep.subr.bf16.mxu0 0
    %194 = vmatpush1.bf16.xpose.msra.mxu0 0
    %195 = vmatprep.subr.bf16.mxu0 0
    %196 = vmatpush1.bf16.xpose.msra.mxu0 0
    %197 = vmatprep.subr.bf16.mxu0 0
    %198 = vmatpush1.bf16.xpose.msra.mxu0 0
    %199 = vmatprep.subr.bf16.mxu0 0
    %200 = vmatpush1.bf16.xpose.msra.mxu0 0
    %201 = vmatprep.subr.bf16.mxu0 0
    %202 = vmatpush1.bf16.xpose.msra.mxu0 0
    %203 = vmatprep.subr.bf16.mxu0 0
    %204 = vmatpush1.bf16.xpose.msra.mxu0 0
    %205 = vmatprep.mubr.bf16.mxu0 %v63
    %206 = vmatmul.mubr.bf16.gmra.mrb[0].mxu0 %v62
    %v207 = vpop.f32.mrb[0].mxu0
    %v208 = vadd.f32 %v91, %v207
    %v209 = vpop.f32.mrb[0].mxu0
    %v210 = vpop.f32.mrb[0].mxu0
    %v211 = vpop.f32.mrb[0].mxu0
    %212 = vdwg.mxu0
    %213 = vmatprep.subr.bf16.mxu0 %v144
    %214 = vmatpush1.bf16.xpose.msra.mxu0 %v143
    %215 = vmatprep.subr.bf16.mxu0 %v152
    %216 = vmatpush1.bf16.xpose.msra.mxu0 %v151
    %217 = vmatprep.subr.bf16.mxu0 0
    %218 = vmatpush1.bf16.xpose.msra.mxu0 0
    %219 = vmatprep.subr.bf16.mxu0 0
    %220 = vmatpush1.bf16.xpose.msra.mxu0 0
    %221 = vmatprep.subr.bf16.mxu0 0
    %222 = vmatpush1.bf16.xpose.msra.mxu0 0
    %223 = vmatprep.subr.bf16.mxu0 0
    %224 = vmatpush1.bf16.xpose.msra.mxu0 0
    %225 = vmatprep.subr.bf16.mxu0 0
    %226 = vmatpush1.bf16.xpose.msra.mxu0 0
    %227 = vmatprep.subr.bf16.mxu0 0
    %228 = vmatpush1.bf16.xpose.msra.mxu0 0
    %229 = vmatprep.subr.bf16.mxu0 0
    %230 = vmatpush1.bf16.xpose.msra.mxu0 0
    %231 = vmatprep.subr.bf16.mxu0 0
    %232 = vmatpush1.bf16.xpose.msra.mxu0 0
    %233 = vmatprep.subr.bf16.mxu0 0
    %234 = vmatpush1.bf16.xpose.msra.mxu0 0
    %235 = vmatprep.subr.bf16.mxu0 0
    %236 = vmatpush1.bf16.xpose.msra.mxu0 0
    %237 = vmatprep.subr.bf16.mxu0 0
    %238 = vmatpush1.bf16.xpose.msra.mxu0 0
    %239 = vmatprep.subr.bf16.mxu0 0
    %240 = vmatpush1.bf16.xpose.msra.mxu0 0
    %241 = vmatprep.subr.bf16.mxu0 0
    %242 = vmatpush1.bf16.xpose.msra.mxu0 0
    %243 = vmatprep.subr.bf16.mxu0 0
    %244 = vmatpush1.bf16.xpose.msra.mxu0 0
    %245 = vmatprep.mubr.bf16.mxu0 %v65
    %246 = vmatmul.mubr.bf16.gmra.mrb[0].mxu0 %v64
    %v247 = vpop.f32.mrb[0].mxu0
    %v248 = vadd.f32 %v208, %v247
    %v249 = vpop.f32.mrb[0].mxu0
    %v250 = vpop.f32.mrb[0].mxu0
    %v251 = vpop.f32.mrb[0].mxu0
    %252 = vdwg.mxu0
    %253 = vmatprep.subr.bf16.mxu0 %v146
    %254 = vmatpush1.bf16.xpose.msra.mxu0 %v145
    %255 = vmatprep.subr.bf16.mxu0 %v154
    %256 = vmatpush1.bf16.xpose.msra.mxu0 %v153
    %257 = vmatprep.subr.bf16.mxu0 0
    %258 = vmatpush1.bf16.xpose.msra.mxu0 0
    %259 = vmatprep.subr.bf16.mxu0 0
    %260 = vmatpush1.bf16.xpose.msra.mxu0 0
    %261 = vmatprep.subr.bf16.mxu0 0
    %262 = vmatpush1.bf16.xpose.msra.mxu0 0
    %263 = vmatprep.subr.bf16.mxu0 0
    %264 = vmatpush1.bf16.xpose.msra.mxu0 0
    %265 = vmatprep.subr.bf16.mxu0 0
    %266 = vmatpush1.bf16.xpose.msra.mxu0 0
    %267 = vmatprep.subr.bf16.mxu0 0
    %268 = vmatpush1.bf16.xpose.msra.mxu0 0
    %269 = vmatprep.subr.bf16.mxu0 0
    %270 = vmatpush1.bf16.xpose.msra.mxu0 0
    %271 = vmatprep.subr.bf16.mxu0 0
    %272 = vmatpush1.bf16.xpose.msra.mxu0 0
    %273 = vmatprep.subr.bf16.mxu0 0
    %274 = vmatpush1.bf16.xpose.msra.mxu0 0
    %275 = vmatprep.subr.bf16.mxu0 0
    %276 = vmatpush1.bf16.xpose.msra.mxu0 0
    %277 = vmatprep.subr.bf16.mxu0 0
    %278 = vmatpush1.bf16.xpose.msra.mxu0 0
    %279 = vmatprep.subr.bf16.mxu0 0
    %280 = vmatpush1.bf16.xpose.msra.mxu0 0
    %281 = vmatprep.subr.bf16.mxu0 0
    %282 = vmatpush1.bf16.xpose.msra.mxu0 0
    %283 = vmatprep.subr.bf16.mxu0 0
    %284 = vmatpush1.bf16.xpose.msra.mxu0 0
    %285 = vmatprep.mubr.bf16.mxu0 %v67
    %286 = vmatmul.mubr.bf16.gmra.mrb[0].mxu0 %v66
    %v287 = vpop.f32.mrb[0].mxu0
    %v288 = vadd.f32 %v248, %v287
    %v289 = vpop.f32.mrb[0].mxu0
    %v290 = vpop.f32.mrb[0].mxu0
    %v291 = vpop.f32.mrb[0].mxu0
    %292 = vdwg.mxu0
    %293 = vmatprep.subr.bf16.mxu0 %v148
    %294 = vmatpush1.bf16.xpose.msra.mxu0 %v147
    %295 = vmatprep.subr.bf16.mxu0 %v156
    %296 = vmatpush1.bf16.xpose.msra.mxu0 %v155
    %297 = vmatprep.subr.bf16.mxu0 0
    %298 = vmatpush1.bf16.xpose.msra.mxu0 0
    %299 = vmatprep.subr.bf16.mxu0 0
    %300 = vmatpush1.bf16.xpose.msra.mxu0 0
    %301 = vmatprep.subr.bf16.mxu0 0
    %302 = vmatpush1.bf16.xpose.msra.mxu0 0
    %303 = vmatprep.subr.bf16.mxu0 0
    %304 = vmatpush1.bf16.xpose.msra.mxu0 0
    %305 = vmatprep.subr.bf16.mxu0 0
    %306 = vmatpush1.bf16.xpose.msra.mxu0 0
    %307 = vmatprep.subr.bf16.mxu0 0
    %308 = vmatpush1.bf16.xpose.msra.mxu0 0
    %309 = vmatprep.subr.bf16.mxu0 0
    %310 = vmatpush1.bf16.xpose.msra.mxu0 0
    %311 = vmatprep.subr.bf16.mxu0 0
    %312 = vmatpush1.bf16.xpose.msra.mxu0 0
    %313 = vmatprep.subr.bf16.mxu0 0
    %314 = vmatpush1.bf16.xpose.msra.mxu0 0
    %315 = vmatprep.subr.bf16.mxu0 0
    %316 = vmatpush1.bf16.xpose.msra.mxu0 0
    %317 = vmatprep.subr.bf16.mxu0 0
    %318 = vmatpush1.bf16.xpose.msra.mxu0 0
    %319 = vmatprep.subr.bf16.mxu0 0
    %320 = vmatpush1.bf16.xpose.msra.mxu0 0
    %321 = vmatprep.subr.bf16.mxu0 0
    %322 = vmatpush1.bf16.xpose.msra.mxu0 0
    %323 = vmatprep.subr.bf16.mxu0 0
    %324 = vmatpush1.bf16.xpose.msra.mxu0 0
    %325 = vmatprep.mubr.bf16.mxu0 %v69
    %326 = vmatmul.mubr.bf16.gmra.mrb[0].mxu0 %v68
    %v327 = vpop.f32.mrb[0].mxu0
    %v328 = vadd.f32 %v288, %v327
    %v329 = vpop.f32.mrb[0].mxu0
    %v330 = vpop.f32.mrb[0].mxu0
    %v331 = vpop.f32.mrb[0].mxu0
    %332 = vdwg.mxu0
    %v333 = vlaneseq
    %v334 = vshrl.u32 %v333, 7
    %vm335 = vcmp.eq.s32.totalorder %v334, 1
    %v336 = vsel %vm335, 0.5, %v328
    %vm337 = vcmask 254976
    %338 = vst.msk [vmem:[#allocation2] sm:$0x3] %vm337, %v336
    // Predicated region
    $region14: #{mock_embedding_forward.1} parent=1 // pred_check
      _
    $region15: #{mock_embedding_forward.1} parent=1 // pred_check_branch
      %340 = sbr.rel (0) target = $region17
    $region16: #{mock_embedding_forward.1} parent=1 // pred_region
      %s342 = ssub.s32 32, 32
      %343 = vsyncadd [#allocation3], %s342
      %s345 = sshll.u32 [#allocation2], 4
      %s346 = int_to_ptr.vmem [resolvable:$true] %s345
      %348 = dma.vmem_to_hbm [thread:$0]  %s346, 32, %s3, [#allocation3]
    $region17: #{mock_embedding_forward.1} parent=1 // pred_fallthru
      _
    // Predicated region
    $region18: #{mock_embedding_forward.1} parent=1 // pred_check
      _
    $region19: #{mock_embedding_forward.1} parent=1 // pred_check_branch
      %350 = sbr.rel (0) target = $region21
    $region20: #{mock_embedding_forward.1} parent=1 // pred_region
      %351 = dma.done [#allocation3], 32
    $region21: #{mock_embedding_forward.1} parent=1 // pred_fallthru
      _
    %352 = vsyncpa [#allocation3], 1

</llo_original>
